<compile_context>
chip_gen: v7x
topology: tpu7x:2x2x1
jax: 0.10.0
libtpu: 0.0.40
codegen_flags: <defaults>
</compile_context>

<pallas_src>
import functools

import jax
import jax.numpy as jnp
from jax.experimental import pallas as pl
from jax.experimental.pallas import tpu as pltpu

_EPS = 1e-05
_LANES = 128
_MAX_TILE_ROWS = 1024  # hard cap on (rows, 128) tile height


def _fused_loss_kernel(hm_p_ref, hm_t_ref, off_p_ref, off_t_ref, out_ref, *,
                       alpha, gamma, weight_hm, weight_off,
                       hw, tile_rows, need_mask):
    p = hm_p_ref[0, 0].astype(jnp.float32)
    tt = hm_t_ref[0, 0].astype(jnp.float32)

    # ---- CenterNet focal loss -------------------------------------------
    pos_w = (tt == 1.0).astype(jnp.float32)
    neg_w = (tt == 0.0).astype(jnp.float32)
    a = jnp.where(tt == 1.0, jnp.float32(alpha), jnp.float32(1.0 - alpha))

    g = float(gamma)
    if g == 2.0:
        pow_g = lambda x: x * x                      # VPU, not EUP
    elif g == float(int(g)) and int(g) >= 0:
        def pow_g(x, _n=int(g)):
            r = jnp.ones_like(x)
            for _ in range(_n):
                r = r * x
            return r
    else:
        pow_g = lambda x: jnp.power(x, jnp.float32(g))

    one_m_p = 1.0 - p
    pos_loss = jnp.log(p + _EPS) * pow_g(one_m_p) * pos_w
    neg_loss = jnp.log(one_m_p + _EPS) * pow_g(p) * neg_w
    fl = a * (pos_loss + neg_loss)

    # ---- masked SmoothL1 offset loss (beta = 1.0, torch default) --------
    # The single heatmap-truth tile masks every offset channel; summing the
    # channels before masking is exact because the mask factors out.
    sl1 = jnp.zeros_like(p)
    for c in range(off_p_ref.shape[1]):
        d = off_p_ref[0, c].astype(jnp.float32) - off_t_ref[0, c].astype(jnp.float32)
        ad = jnp.abs(d)
        sl1 = sl1 + jnp.where(ad < 1.0, 0.5 * d * d, ad - 0.5)
    off_masked = sl1 * tt
    # sum(masked[masked != 0]) == sum(masked) for finite inputs.

    # weighted combination: weight_hm * (-sum fl) + weight_off * sum(masked)
    contrib = jnp.float32(weight_off) * off_masked - jnp.float32(weight_hm) * fl

    if need_mask:
        t = pl.program_id(1)
        rows = t * tile_rows + jax.lax.broadcasted_iota(
            jnp.int32, (tile_rows, _LANES), 0)
        cols = jax.lax.broadcasted_iota(jnp.int32, (tile_rows, _LANES), 1)
        contrib = jnp.where(rows * _LANES + cols < hw, contrib, 0.0)

    # per-tile reduce to a lane-dense (1,128) partial (VPU tree + one XLU
    # sublane fold); each grid cell owns its own output block.
    out_ref[...] = jnp.sum(contrib, axis=0, keepdims=True).reshape(1, 1, _LANES)


def _to_slab(x, hw, r):
    b, c = x.shape[0], x.shape[1]
    x = x.reshape(b, c, hw)
    if r * _LANES != hw:
        # TODO(synk): this padding copy only happens when H*W is not a
        # multiple of 128 (atypical for CenterNet heads).
        x = jnp.pad(x, ((0, 0), (0, 0), (0, r * _LANES - hw)))
    return x.reshape(b, c, r, _LANES)


def custom_loss(x_hm, x_off, x_hm_truth, x_off_truth,
                alpha=0.5, gamma=2.0, weight_hm=0.5, weight_off=0.5):
    B, c_hm, H, W = x_hm.shape
    assert c_hm == 1 and x_hm_truth.shape == (B, 1, H, W)
    assert x_off.shape[0] == B and x_off.shape[2:] == (H, W)
    assert x_off_truth.shape == x_off.shape
    c_off = x_off.shape[1]

    hw = H * W
    r = -(-hw // _LANES)                       # rows of 128 lanes per image

    hm_p = _to_slab(x_hm, hw, r)
    hm_t = _to_slab(x_hm_truth, hw, r)
    off_p = _to_slab(x_off, hw, r)
    off_t = _to_slab(x_off_truth, hw, r)

    # Cap tile height so the single-buffered per-step input working set stays
    # ~4 MiB (=> <= ~8 MiB double-buffered, safe under the v5e 16 MiB default).
    bytes_per_row = _LANES * (hm_p.dtype.itemsize + hm_t.dtype.itemsize
                              + c_off * (off_p.dtype.itemsize
                                         + off_t.dtype.itemsize))
    cap = max(8, min(_MAX_TILE_ROWS, ((4 << 20) // bytes_per_row) // 8 * 8))
    tile_rows = r if r <= cap else cap
    n_tiles = -(-r // tile_rows)
    need_mask = (r * _LANES != hw) or (r % tile_rows != 0)

    kernel = functools.partial(
        _fused_loss_kernel,
        alpha=float(alpha), gamma=float(gamma),
        weight_hm=float(weight_hm), weight_off=float(weight_off),
        hw=hw, tile_rows=tile_rows, need_mask=need_mask)

    partials = pl.pallas_call(
        kernel,
        out_shape=jax.ShapeDtypeStruct((B, n_tiles, _LANES), jnp.float32),
        grid_spec=pltpu.PrefetchScalarGridSpec(
            num_scalar_prefetch=0,
            grid=(B, n_tiles),
            in_specs=[
                pl.BlockSpec((1, 1, tile_rows, _LANES),
                             lambda b, t: (b, 0, t, 0)),
                pl.BlockSpec((1, 1, tile_rows, _LANES),
                             lambda b, t: (b, 0, t, 0)),
                pl.BlockSpec((1, c_off, tile_rows, _LANES),
                             lambda b, t: (b, 0, t, 0)),
                pl.BlockSpec((1, c_off, tile_rows, _LANES),
                             lambda b, t: (b, 0, t, 0)),
            ],
            out_specs=pl.BlockSpec((1, 1, _LANES), lambda b, t: (b, t, 0)),
        ),
        compiler_params=pltpu.CompilerParams(
            dimension_semantics=("parallel", "parallel")),
    )(hm_p, hm_t, off_p, off_t)

    return jnp.sum(partials)


def _reference_loss(x_hm, x_off, x_hm_truth, x_off_truth,
                    alpha=0.5, gamma=2.0, weight_hm=0.5, weight_off=0.5):
    """Pure-JAX reference mirroring the PyTorch module (in float32)."""
    p = x_hm.astype(jnp.float32)
    t = x_hm_truth.astype(jnp.float32)
    pos_w = (t == 1.0).astype(jnp.float32)
    neg_w = (t == 0.0).astype(jnp.float32)
    a = jnp.where(t == 1.0, alpha, 1.0 - alpha)
    pos_loss = jnp.log(p + _EPS) * (1.0 - p) ** gamma * pos_w
    neg_loss = jnp.log(1.0 - p + _EPS) * p ** gamma * neg_w
    hm_loss = -jnp.sum(a * (pos_loss + neg_loss))

    d = x_off.astype(jnp.float32) - x_off_truth.astype(jnp.float32)
    ad = jnp.abs(d)
    sl1 = jnp.where(ad < 1.0, 0.5 * d * d, ad - 0.5)
    masked = sl1 * x_hm_truth.astype(jnp.float32)
    off_loss = jnp.sum(jnp.where(masked != 0, masked, 0.0))
    return weight_hm * hm_loss + weight_off * off_loss


def _make_inputs(key, B, C_OFF, H, W):
    k1, k2, k3, k4 = jax.random.split(key, 4)
    # predictions in (0,1); truth heatmap with exact 1s / 0s and in-betweens
    x_hm = jax.random.uniform(k1, (B, 1, H, W), jnp.float32, 1e-3, 1.0 - 1e-3)
    raw = jax.random.uniform(k2, (B, 1, H, W), jnp.float32)
    x_hm_truth = jnp.where(raw > 0.95, 1.0, jnp.where(raw < 0.6, 0.0, raw))
    x_off = jax.random.normal(k3, (B, C_OFF, H, W), jnp.float32)
    x_off_truth = jax.random.normal(k4, (B, C_OFF, H, W), jnp.float32)
    return x_hm, x_off, x_hm_truth, x_off_truth


if __name__ == "__main__":
    key = jax.random.PRNGKey(0)
    ka, kb = jax.random.split(key)

    loss_fn = jax.jit(lambda a, b, c, d: custom_loss(a, b, c, d))

    # Case 1: H*W is a multiple of 128 (no pad / no mask path).
    args1 = _make_inputs(ka, B=2, C_OFF=2, H=16, W=16)
    loss1 = jax.block_until_ready(loss_fn(*args1))
    ref1 = _reference_loss(*args1)
    assert jnp.allclose(loss1, ref1, rtol=1e-4, atol=1e-4), (loss1, ref1)

    # Case 2: H*W not a multiple of 128 (pad + in-kernel validity mask path).
    args2 = _make_inputs(kb, B=2, C_OFF=2, H=12, W=12)
    loss2 = jax.block_until_ready(loss_fn(*args2))
    ref2 = _reference_loss(*args2)
    assert jnp.allclose(loss2, ref2, rtol=1e-4, atol=1e-4), (loss2, ref2)

    print("KERNEL_OK")
</pallas_src>

<mosaic_0001>
module attributes {stable_mosaic.version = 11 : i64} {
  func.func @_fused_loss_kernel(%arg0: i32, %arg1: i32, %arg2: memref<1x1x2x128xf32, #tpu.memory_space<vmem>>, %arg3: memref<1x1x2x128xf32, #tpu.memory_space<vmem>>, %arg4: memref<1x2x2x128xf32, #tpu.memory_space<vmem>>, %arg5: memref<1x2x2x128xf32, #tpu.memory_space<vmem>>, %arg6: memref<1x1x128xf32, #tpu.memory_space<vmem>>) attributes {dimension_semantics = [#tpu.dimension_semantics<parallel>, #tpu.dimension_semantics<parallel>], iteration_bounds = array<i64: 2, 1>, scalar_prefetch = 0 : i64, scratch_operands = 0 : i64, tpu.core_type = #tpu.core_type<tc>, window_params = [{transform_indices = @transform_0, window_bounds = array<i64: 1, 1, 2, 128>}, {transform_indices = @transform_1, window_bounds = array<i64: 1, 1, 2, 128>}, {transform_indices = @transform_2, window_bounds = array<i64: 1, 2, 2, 128>}, {transform_indices = @transform_3, window_bounds = array<i64: 1, 2, 2, 128>}, {transform_indices = @transform_4, window_bounds = array<i64: 1, 1, 128>}]} {
    %c0 = arith.constant 0 : index
    %c0_0 = arith.constant 0 : index
    %c0_1 = arith.constant 0 : index
    %c0_2 = arith.constant 0 : index
    %0 = vector.load %arg2[%c0, %c0_0, %c0_1, %c0_2] : memref<1x1x2x128xf32, #tpu.memory_space<vmem>>, vector<1x1x2x128xf32>
    %1 = vector.shape_cast %0 : vector<1x1x2x128xf32> to vector<2x128xf32>
    %c0_3 = arith.constant 0 : index
    %c0_4 = arith.constant 0 : index
    %c0_5 = arith.constant 0 : index
    %c0_6 = arith.constant 0 : index
    %2 = vector.load %arg3[%c0_3, %c0_4, %c0_5, %c0_6] : memref<1x1x2x128xf32, #tpu.memory_space<vmem>>, vector<1x1x2x128xf32>
    %3 = vector.shape_cast %2 : vector<1x1x2x128xf32> to vector<2x128xf32>
    %cst = arith.constant 1.000000e+00 : f32
    %4 = vector.broadcast %cst : f32 to vector<2x128xf32>
    %5 = arith.cmpf oeq, %3, %4 : vector<2x128xf32>
    %6 = arith.extui %5 : vector<2x128xi1> to vector<2x128xi32>
    %7 = arith.sitofp %6 : vector<2x128xi32> to vector<2x128xf32>
    %cst_7 = arith.constant 0.000000e+00 : f32
    %8 = vector.broadcast %cst_7 : f32 to vector<2x128xf32>
    %9 = arith.cmpf oeq, %3, %8 : vector<2x128xf32>
    %10 = arith.extui %9 : vector<2x128xi1> to vector<2x128xi32>
    %11 = arith.sitofp %10 : vector<2x128xi32> to vector<2x128xf32>
    %cst_8 = arith.constant 1.000000e+00 : f32
    %12 = vector.broadcast %cst_8 : f32 to vector<2x128xf32>
    %13 = arith.cmpf oeq, %3, %12 : vector<2x128xf32>
    %cst_9 = arith.constant 5.000000e-01 : f32
    %cst_10 = arith.constant 5.000000e-01 : f32
    %14 = vector.broadcast %cst_9 : f32 to vector<2x128xf32>
    %15 = vector.broadcast %cst_10 : f32 to vector<2x128xf32>
    %16 = arith.select %13, %14, %15 : vector<2x128xi1>, vector<2x128xf32>
    %cst_11 = arith.constant 1.000000e+00 : f32
    %17 = vector.broadcast %cst_11 : f32 to vector<2x128xf32>
    %18 = arith.subf %17, %1 : vector<2x128xf32>
    %cst_12 = arith.constant 9.99999974E-6 : f32
    %19 = vector.broadcast %cst_12 : f32 to vector<2x128xf32>
    %20 = arith.addf %1, %19 : vector<2x128xf32>
    %21 = math.log %20 : vector<2x128xf32>
    %22 = arith.mulf %18, %18 : vector<2x128xf32>
    %23 = arith.mulf %21, %22 : vector<2x128xf32>
    %24 = arith.mulf %23, %7 : vector<2x128xf32>
    %cst_13 = arith.constant 9.99999974E-6 : f32
    %25 = vector.broadcast %cst_13 : f32 to vector<2x128xf32>
    %26 = arith.addf %18, %25 : vector<2x128xf32>
    %27 = math.log %26 : vector<2x128xf32>
    %28 = arith.mulf %1, %1 : vector<2x128xf32>
    %29 = arith.mulf %27, %28 : vector<2x128xf32>
    %30 = arith.mulf %29, %11 : vector<2x128xf32>
    %31 = arith.addf %24, %30 : vector<2x128xf32>
    %32 = arith.mulf %16, %31 : vector<2x128xf32>
    %cst_14 = arith.constant 0.000000e+00 : f32
    %33 = vector.broadcast %cst_14 : f32 to vector<2x128xf32>
    %c0_15 = arith.constant 0 : index
    %c0_16 = arith.constant 0 : index
    %c0_17 = arith.constant 0 : index
    %c0_18 = arith.constant 0 : index
    %34 = vector.load %arg4[%c0_15, %c0_16, %c0_17, %c0_18] : memref<1x2x2x128xf32, #tpu.memory_space<vmem>>, vector<1x1x2x128xf32>
    %35 = vector.shape_cast %34 : vector<1x1x2x128xf32> to vector<2x128xf32>
    %c0_19 = arith.constant 0 : index
    %c0_20 = arith.constant 0 : index
    %c0_21 = arith.constant 0 : index
    %c0_22 = arith.constant 0 : index
    %36 = vector.load %arg5[%c0_19, %c0_20, %c0_21, %c0_22] : memref<1x2x2x128xf32, #tpu.memory_space<vmem>>, vector<1x1x2x128xf32>
    %37 = vector.shape_cast %36 : vector<1x1x2x128xf32> to vector<2x128xf32>
    %38 = arith.subf %35, %37 : vector<2x128xf32>
    %39 = math.absf %38 : vector<2x128xf32>
    %cst_23 = arith.constant 1.000000e+00 : f32
    %40 = vector.broadcast %cst_23 : f32 to vector<2x128xf32>
    %41 = arith.cmpf olt, %39, %40 : vector<2x128xf32>
    %cst_24 = arith.constant 5.000000e-01 : f32
    %42 = vector.broadcast %cst_24 : f32 to vector<2x128xf32>
    %43 = arith.mulf %42, %38 : vector<2x128xf32>
    %44 = arith.mulf %43, %38 : vector<2x128xf32>
    %cst_25 = arith.constant 5.000000e-01 : f32
    %45 = vector.broadcast %cst_25 : f32 to vector<2x128xf32>
    %46 = arith.subf %39, %45 : vector<2x128xf32>
    %47 = arith.select %41, %44, %46 : vector<2x128xi1>, vector<2x128xf32>
    %48 = arith.addf %33, %47 : vector<2x128xf32>
    %c0_26 = arith.constant 0 : index
    %c1 = arith.constant 1 : index
    %c0_27 = arith.constant 0 : index
    %c0_28 = arith.constant 0 : index
    %49 = vector.load %arg4[%c0_26, %c1, %c0_27, %c0_28] : memref<1x2x2x128xf32, #tpu.memory_space<vmem>>, vector<1x1x2x128xf32>
    %50 = vector.shape_cast %49 : vector<1x1x2x128xf32> to vector<2x128xf32>
    %c0_29 = arith.constant 0 : index
    %c1_30 = arith.constant 1 : index
    %c0_31 = arith.constant 0 : index
    %c0_32 = arith.constant 0 : index
    %51 = vector.load %arg5[%c0_29, %c1_30, %c0_31, %c0_32] : memref<1x2x2x128xf32, #tpu.memory_space<vmem>>, vector<1x1x2x128xf32>
    %52 = vector.shape_cast %51 : vector<1x1x2x128xf32> to vector<2x128xf32>
    %53 = arith.subf %50, %52 : vector<2x128xf32>
    %54 = math.absf %53 : vector<2x128xf32>
    %cst_33 = arith.constant 1.000000e+00 : f32
    %55 = vector.broadcast %cst_33 : f32 to vector<2x128xf32>
    %56 = arith.cmpf olt, %54, %55 : vector<2x128xf32>
    %cst_34 = arith.constant 5.000000e-01 : f32
    %57 = vector.broadcast %cst_34 : f32 to vector<2x128xf32>
    %58 = arith.mulf %57, %53 : vector<2x128xf32>
    %59 = arith.mulf %58, %53 : vector<2x128xf32>
    %cst_35 = arith.constant 5.000000e-01 : f32
    %60 = vector.broadcast %cst_35 : f32 to vector<2x128xf32>
    %61 = arith.subf %54, %60 : vector<2x128xf32>
    %62 = arith.select %56, %59, %61 : vector<2x128xi1>, vector<2x128xf32>
    %63 = arith.addf %48, %62 : vector<2x128xf32>
    %64 = arith.mulf %63, %3 : vector<2x128xf32>
    %cst_36 = arith.constant 5.000000e-01 : f32
    %65 = vector.broadcast %cst_36 : f32 to vector<2x128xf32>
    %66 = arith.mulf %65, %64 : vector<2x128xf32>
    %cst_37 = arith.constant 5.000000e-01 : f32
    %67 = vector.broadcast %cst_37 : f32 to vector<2x128xf32>
    %68 = arith.mulf %67, %32 : vector<2x128xf32>
    %69 = arith.subf %66, %68 : vector<2x128xf32>
    %cst_38 = arith.constant dense<0.000000e+00> : vector<128xf32>
    %70 = vector.multi_reduction <add>, %69, %cst_38 [0] : vector<2x128xf32> to vector<128xf32>
    %71 = vector.shape_cast %70 : vector<128xf32> to vector<1x128xf32>
    %72 = vector.shape_cast %71 : vector<1x128xf32> to vector<1x1x128xf32>
    %c0_39 = arith.constant 0 : index
    %c0_40 = arith.constant 0 : index
    %c0_41 = arith.constant 0 : index
    %73 = vector.load %arg6[%c0_39, %c0_40, %c0_41] : memref<1x1x128xf32, #tpu.memory_space<vmem>>, vector<1x1x128xf32>
    tpu.vector_store %arg6[%c0_39, %c0_40, %c0_41], %72 {strides = array<i32>} : memref<1x1x128xf32, #tpu.memory_space<vmem>>, vector<1x1x128xf32>,
    return
  }
  func.func @transform_0(%arg0: i32, %arg1: i32) -> (i32, i32, i32, i32) {
    %c0_i32 = arith.constant 0 : i32
    %c0_i32_0 = arith.constant 0 : i32
    %c0_i32_1 = arith.constant 0 : i32
    return %arg0, %c0_i32, %arg1, %c0_i32_0 : i32, i32, i32, i32
  }
  func.func @transform_1(%arg0: i32, %arg1: i32) -> (i32, i32, i32, i32) {
    %c0_i32 = arith.constant 0 : i32
    %c0_i32_0 = arith.constant 0 : i32
    %c0_i32_1 = arith.constant 0 : i32
    return %arg0, %c0_i32, %arg1, %c0_i32_0 : i32, i32, i32, i32
  }
  func.func @transform_2(%arg0: i32, %arg1: i32) -> (i32, i32, i32, i32) {
    %c0_i32 = arith.constant 0 : i32
    %c0_i32_0 = arith.constant 0 : i32
    %c0_i32_1 = arith.constant 0 : i32
    return %arg0, %c0_i32, %arg1, %c0_i32_0 : i32, i32, i32, i32
  }
  func.func @transform_3(%arg0: i32, %arg1: i32) -> (i32, i32, i32, i32) {
    %c0_i32 = arith.constant 0 : i32
    %c0_i32_0 = arith.constant 0 : i32
    %c0_i32_1 = arith.constant 0 : i32
    return %arg0, %c0_i32, %arg1, %c0_i32_0 : i32, i32, i32, i32
  }
  func.func @transform_4(%arg0: i32, %arg1: i32) -> (i32, i32, i32) {
    %c0_i32 = arith.constant 0 : i32
    %c0_i32_0 = arith.constant 0 : i32
    return %arg0, %arg1, %c0_i32 : i32, i32, i32
  }
}

</mosaic_0001>

<llo_original>
// kernel: _lambda_.1
$region0: #{_lambda_.1}
  #allocation0 [shape = 'u32[]', space=smem, size = 0x4, offset = 0x4, fixed_abs, tag = 'smem constant byte address 0x4 - core index']
  #allocation1 [shape = 'u32[144,128]{1,0:T(1,128)}', space=vmem, size = 0x12000, scoped, tag = 'internal scratch']
  %s0 = inlined_call_operand.vmem [shape: f32[2,1,2,128], index: 0, kind: input, shape index: {}]
  %s1 = inlined_call_operand.vmem [shape: f32[2,1,2,128], index: 1, kind: input, shape index: {}]
  %s2 = inlined_call_operand.vmem [shape: f32[2,2,2,128], index: 2, kind: input, shape index: {}]
  %s3 = inlined_call_operand.vmem [shape: f32[2,2,2,128], index: 3, kind: input, shape index: {}]
  %s4 = inlined_call_operand.vmem [shape: f32[2,1,128], index: 4, kind: output, shape index: {}]
  %s5 = sld [smem:[#allocation0]]
  $region49: #{_lambda_.1} parent=0
    _
  %s7 = ssub.s32 1, %s5
  %s8 = scalar_select 0, %s7, %s5
  loop: start=0, step=1, limit=4
  $region2: #{_lambda_.1} parent=0 // loop_pre_header
    _
  $region3: #{_lambda_.1} parent=0 // loop_header
    %s10 = sphi 0, %s14
    %p11 = scmp.ge.s32.totalorder %s10, 4
    %s17 = sphi 0, %s29
    %s18 = sphi 0, %s25
    %s19 = sphi 0, %s17
    %s20 = sphi 0, %s18
    %s21 = sphi 0, %s19
    %s22 = sphi 0, %s20
    %s34 = sphi 0, %s36
    %s37 = sphi 0, %s34
    %s38 = sphi 0, %s37
    %s54 = sphi 0, %s38
    %s62 = sphi 0, %s64
    %s65 = sphi 0, %s62
    %s66 = sphi 0, %s65
    %s82 = sphi 0, %s66
    %s90 = sphi 0, %s92
    %s93 = sphi 0, %s90
    %s94 = sphi 0, %s93
    %s110 = sphi 0, %s94
    %s118 = sphi 0, %s120
    %s121 = sphi 0, %s118
    %s122 = sphi 0, %s121
    %s138 = sphi 0, %s122
    %s146 = sphi 0, %s148
    %s149 = sphi 0, %s146
    %s150 = sphi 0, %s149
    %s166 = sphi 0, %s150
  $region4: #{_lambda_.1} parent=0 // loop_header_branch
    %13 = sbr.rel (%p11) target = $region8
  $region5: #{_lambda_.1} parent=0 // loop_body
    %s15 = ssub.s32 %s10, 1
    %s16 = ssub.s32 %s10, 2
    %s23 = sadd.s32 1, %s18
    %p24 = scmp.ge.s32.totalorder %s23, 1
    %s25 = scalar_select %p24, 0, %s23
    %s26 = sadd.s32 1, %s17
    %s27 = scalar_select %p24, %s26, %s17
    %p28 = scmp.ge.s32.totalorder %s27, 2
    %s29 = scalar_select %p28, 0, %s27
    %s30 = ssub.s32 %s17, %s29
    %s31 = ssub.s32 %s18, %s25
    %s32 = sor.u32 %s30, %s31
    %p33 = scmp.eq.s32.totalorder %s32, 0
    %s35 = sadd.s32 %s34, 1
    %s36 = scalar_select %p33, %s34, %s35
    %p39 = pneg %p33
    %p40 = scmp.eq.s32.totalorder %s10, 1
    %p41 = por %p39, %p40
    %p42 = scmp.ne.s32.totalorder %s34, %s37
    %p43 = scmp.eq.s32.totalorder %s10, 0
    %p44 = por %p42, %p43
    %p45 = scmp.ne.s32.totalorder %s34, %s37
    %p46 = scmp.eq.s32.totalorder %s15, 1
    %p47 = por %p45, %p46
    %p48 = scmp.ne.s32.totalorder %s37, %s38
    %p49 = scmp.eq.s32.totalorder %s15, 0
    %p50 = por %p48, %p49
    %p51 = scmp.ne.s32.totalorder %s37, %s38
    %p52 = scmp.eq.s32.totalorder %s16, 1
    %p53 = por %p51, %p52
    %p55 = scmp.ne.s32.totalorder %s38, %s54
    %p56 = scmp.eq.s32.totalorder %s16, 0
    %p57 = por %p55, %p56
    %s58 = ssub.s32 %s17, %s29
    %s59 = ssub.s32 %s18, %s25
    %s60 = sor.u32 %s58, %s59
    %p61 = scmp.eq.s32.totalorder %s60, 0
    %s63 = sadd.s32 %s62, 1
    %s64 = scalar_select %p61, %s62, %s63
    %p67 = pneg %p61
    %p68 = scmp.eq.s32.totalorder %s10, 1
    %p69 = por %p67, %p68
    %p70 = scmp.ne.s32.totalorder %s62, %s65
    %p71 = scmp.eq.s32.totalorder %s10, 0
    %p72 = por %p70, %p71
    %p73 = scmp.ne.s32.totalorder %s62, %s65
    %p74 = scmp.eq.s32.totalorder %s15, 1
    %p75 = por %p73, %p74
    %p76 = scmp.ne.s32.totalorder %s65, %s66
    %p77 = scmp.eq.s32.totalorder %s15, 0
    %p78 = por %p76, %p77
    %p79 = scmp.ne.s32.totalorder %s65, %s66
    %p80 = scmp.eq.s32.totalorder %s16, 1
    %p81 = por %p79, %p80
    %p83 = scmp.ne.s32.totalorder %s66, %s82
    %p84 = scmp.eq.s32.totalorder %s16, 0
    %p85 = por %p83, %p84
    %s86 = ssub.s32 %s17, %s29
    %s87 = ssub.s32 %s18, %s25
    %s88 = sor.u32 %s86, %s87
    %p89 = scmp.eq.s32.totalorder %s88, 0
    %s91 = sadd.s32 %s90, 1
    %s92 = scalar_select %p89, %s90, %s91
    %p95 = pneg %p89
    %p96 = scmp.eq.s32.totalorder %s10, 1
    %p97 = por %p95, %p96
    %p98 = scmp.ne.s32.totalorder %s90, %s93
    %p99 = scmp.eq.s32.totalorder %s10, 0
    %p100 = por %p98, %p99
    %p101 = scmp.ne.s32.totalorder %s90, %s93
    %p102 = scmp.eq.s32.totalorder %s15, 1
    %p103 = por %p101, %p102
    %p104 = scmp.ne.s32.totalorder %s93, %s94
    %p105 = scmp.eq.s32.totalorder %s15, 0
    %p106 = por %p104, %p105
    %p107 = scmp.ne.s32.totalorder %s93, %s94
    %p108 = scmp.eq.s32.totalorder %s16, 1
    %p109 = por %p107, %p108
    %p111 = scmp.ne.s32.totalorder %s94, %s110
    %p112 = scmp.eq.s32.totalorder %s16, 0
    %p113 = por %p111, %p112
    %s114 = ssub.s32 %s17, %s29
    %s115 = ssub.s32 %s18, %s25
    %s116 = sor.u32 %s114, %s115
    %p117 = scmp.eq.s32.totalorder %s116, 0
    %s119 = sadd.s32 %s118, 1
    %s120 = scalar_select %p117, %s118, %s119
    %p123 = pneg %p117
    %p124 = scmp.eq.s32.totalorder %s10, 1
    %p125 = por %p123, %p124
    %p126 = scmp.ne.s32.totalorder %s118, %s121
    %p127 = scmp.eq.s32.totalorder %s10, 0
    %p128 = por %p126, %p127
    %p129 = scmp.ne.s32.totalorder %s118, %s121
    %p130 = scmp.eq.s32.totalorder %s15, 1
    %p131 = por %p129, %p130
    %p132 = scmp.ne.s32.totalorder %s121, %s122
    %p133 = scmp.eq.s32.totalorder %s15, 0
    %p134 = por %p132, %p133
    %p135 = scmp.ne.s32.totalorder %s121, %s122
    %p136 = scmp.eq.s32.totalorder %s16, 1
    %p137 = por %p135, %p136
    %p139 = scmp.ne.s32.totalorder %s122, %s138
    %p140 = scmp.eq.s32.totalorder %s16, 0
    %p141 = por %p139, %p140
    %s142 = ssub.s32 %s17, %s29
    %s143 = ssub.s32 %s18, %s25
    %s144 = sor.u32 %s142, %s143
    %p145 = scmp.eq.s32.totalorder %s144, 0
    %s147 = sadd.s32 %s146, 1
    %s148 = scalar_select %p145, %s146, %s147
    %p151 = pneg %p145
    %p152 = scmp.eq.s32.totalorder %s10, 1
    %p153 = por %p151, %p152
    %p154 = scmp.ne.s32.totalorder %s146, %s149
    %p155 = scmp.eq.s32.totalorder %s10, 0
    %p156 = por %p154, %p155
    %p157 = scmp.ne.s32.totalorder %s146, %s149
    %p158 = scmp.eq.s32.totalorder %s15, 1
    %p159 = por %p157, %p158
    %p160 = scmp.ne.s32.totalorder %s149, %s150
    %p161 = scmp.eq.s32.totalorder %s15, 0
    %p162 = por %p160, %p161
    %p163 = scmp.ne.s32.totalorder %s149, %s150
    %p164 = scmp.eq.s32.totalorder %s16, 1
    %p165 = por %p163, %p164
    %p167 = scmp.ne.s32.totalorder %s150, %s166
    %p168 = scmp.eq.s32.totalorder %s16, 0
    %p169 = por %p167, %p168
    %p170 = scmp.le.s32.totalorder 1, %s10
    %p171 = scmp.lt.s32.totalorder %s10, 3
    %p172 = pnand %p170, %p171
    %p173 = pneg %p172
    // Predicated region
    $region9: #{_lambda_.1} parent=5 // pred_check
      _
    $region10: #{_lambda_.1} parent=5 // pred_check_branch
      %175 = sbr.rel (%p172) target = $region12
    $region11: #{_lambda_.1} parent=5 // pred_region
      %s176 = ssub.s32 %s10, 1
    $region12: #{_lambda_.1} parent=5 // pred_fallthru
      _
    %p177 = scmp.lt.s32.totalorder %s10, 2
    // Predicated region
    $region13: #{_lambda_.1} parent=5 // pred_check
      %p178 = pneg %p177
    $region14: #{_lambda_.1} parent=5 // pred_check_branch
      %180 = sbr.rel (%p178) target = $region16
    $region15: #{_lambda_.1} parent=5 // pred_region
      // Predicated region
      $region17: #{_lambda_.1} parent=15 // pred_check
        %p181 = pneg %p44
      $region18: #{_lambda_.1} parent=15 // pred_check_branch
        %183 = sbr.rel (%p181) target = $region20
      $region19: #{_lambda_.1} parent=15 // pred_region
        %p184 = scmp.lt.s32.totalorder %s17, 1
        %s185 = scalar_select %p184, %s17, 1
        %p186 = scmp.lt.s32.totalorder %s18, 0
        %s187 = scalar_select %p186, %s18, 0
        %s188 = sadd.s32 %s187, %s185
        %s189 = smul.addr %s188, 2
        %s190 = scalar_lea.vmem %s0, %s189
      $region20: #{_lambda_.1} parent=15 // pred_fallthru
        _
      // Predicated region
      $region21: #{_lambda_.1} parent=15 // pred_check
        %p191 = pneg %p72
      $region22: #{_lambda_.1} parent=15 // pred_check_branch
        %193 = sbr.rel (%p191) target = $region24
      $region23: #{_lambda_.1} parent=15 // pred_region
        %p194 = scmp.lt.s32.totalorder %s17, 1
        %s195 = scalar_select %p194, %s17, 1
        %p196 = scmp.lt.s32.totalorder %s18, 0
        %s197 = scalar_select %p196, %s18, 0
        %s198 = sadd.s32 %s197, %s195
        %s199 = smul.addr %s198, 2
        %s200 = scalar_lea.vmem %s1, %s199
      $region24: #{_lambda_.1} parent=15 // pred_fallthru
        _
      // Predicated region
      $region25: #{_lambda_.1} parent=15 // pred_check
        %p201 = pneg %p100
      $region26: #{_lambda_.1} parent=15 // pred_check_branch
        %203 = sbr.rel (%p201) target = $region28
      $region27: #{_lambda_.1} parent=15 // pred_region
        %p204 = scmp.lt.s32.totalorder %s17, 1
        %s205 = scalar_select %p204, %s17, 1
        %p206 = scmp.lt.s32.totalorder %s18, 0
        %s207 = scalar_select %p206, %s18, 0
        %s208 = smul.addr %s205, 2
        %s209 = sadd.s32 %s207, %s208
        %s210 = smul.addr %s209, 2
        %s211 = scalar_lea.vmem %s2, %s210
      $region28: #{_lambda_.1} parent=15 // pred_fallthru
        _
      // Predicated region
      $region29: #{_lambda_.1} parent=15 // pred_check
        %p212 = pneg %p128
      $region30: #{_lambda_.1} parent=15 // pred_check_branch
        %214 = sbr.rel (%p212) target = $region32
      $region31: #{_lambda_.1} parent=15 // pred_region
        %p215 = scmp.lt.s32.totalorder %s17, 1
        %s216 = scalar_select %p215, %s17, 1
        %p217 = scmp.lt.s32.totalorder %s18, 0
        %s218 = scalar_select %p217, %s18, 0
        %s219 = smul.addr %s216, 2
        %s220 = sadd.s32 %s218, %s219
        %s221 = smul.addr %s220, 2
        %s222 = scalar_lea.vmem %s3, %s221
      $region32: #{_lambda_.1} parent=15 // pred_fallthru
        _
    $region16: #{_lambda_.1} parent=5 // pred_fallthru
      _
    %p223 = scmp.le.s32.totalorder 1, %s10
    %p224 = scmp.lt.s32.totalorder %s10, 3
    %p225 = pnand %p223, %p224
    %p226 = pneg %p225
    // Predicated region
    $region33: #{_lambda_.1} parent=5 // pred_check
      _
    $region34: #{_lambda_.1} parent=5 // pred_check_branch
      %228 = sbr.rel (%p225) target = $region36
    $region35: #{_lambda_.1} parent=5 // pred_region
      %s229 = ssub.s32 %s10, 1
      %p230 = scmp.lt.s32.totalorder %s19, 1
      %s231 = scalar_select %p230, %s19, 1
      %p232 = scmp.lt.s32.totalorder %s20, 0
      %s233 = scalar_select %p232, %s20, 0
      %s234 = sadd.s32 %s233, %s231
      %s235 = smul.addr %s234, 2
      %s236 = scalar_lea.vmem %s0, %s235
      %p237 = pneg %p50
      %p238 = pneg %p47
      %p239 = scmp.lt.s32.totalorder %s19, 1
      %s240 = scalar_select %p239, %s19, 1
      %p241 = scmp.lt.s32.totalorder %s20, 0
      %s242 = scalar_select %p241, %s20, 0
      %s243 = sadd.s32 %s242, %s240
      %s244 = smul.addr %s243, 2
      %s245 = scalar_lea.vmem %s1, %s244
      %p246 = pneg %p78
      %p247 = pneg %p75
      %p248 = scmp.lt.s32.totalorder %s19, 1
      %s249 = scalar_select %p248, %s19, 1
      %p250 = scmp.lt.s32.totalorder %s20, 0
      %s251 = scalar_select %p250, %s20, 0
      %s252 = smul.addr %s249, 2
      %s253 = sadd.s32 %s251, %s252
      %s254 = smul.addr %s253, 2
      %s255 = scalar_lea.vmem %s2, %s254
      %p256 = pneg %p106
      %p257 = pneg %p103
      %p258 = scmp.lt.s32.totalorder %s19, 1
      %s259 = scalar_select %p258, %s19, 1
      %p260 = scmp.lt.s32.totalorder %s20, 0
      %s261 = scalar_select %p260, %s20, 0
      %s262 = smul.addr %s259, 2
      %s263 = sadd.s32 %s261, %s262
      %s264 = smul.addr %s263, 2
      %s265 = scalar_lea.vmem %s3, %s264
      %p266 = pneg %p134
      %p267 = pneg %p131
      %p268 = pneg %p162
      %p269 = pneg %p159
      %p270 = scmp.lt.s32.totalorder %s19, 1
      %s271 = scalar_select %p270, %s19, 1
      %p272 = scmp.lt.s32.totalorder %s20, 0
      %s273 = scalar_select %p272, %s20, 0
      %s274 = sadd.s32 %s273, %s271
      %s275 = scalar_lea.vmem %s4, %s274
      %p276 = scmp.lt.s32.totalorder %s19, 1
      %s277 = scalar_select %p276, %s19, 1
      %p278 = scmp.lt.s32.totalorder %s20, 0
      %s279 = scalar_select %p278, %s20, 0
      %s280 = sadd.s32 %s279, %s277
      %s281 = smul.addr %s280, 2
      %s282 = scalar_lea.vmem %s0, %s281
      %p283 = scmp.lt.s32.totalorder %s19, 1
      %s284 = scalar_select %p283, %s19, 1
      %p285 = scmp.lt.s32.totalorder %s20, 0
      %s286 = scalar_select %p285, %s20, 0
      %s287 = sadd.s32 %s286, %s284
      %s288 = smul.addr %s287, 2
      %s289 = scalar_lea.vmem %s1, %s288
      %p290 = scmp.lt.s32.totalorder %s19, 1
      %s291 = scalar_select %p290, %s19, 1
      %p292 = scmp.lt.s32.totalorder %s20, 0
      %s293 = scalar_select %p292, %s20, 0
      %s294 = smul.addr %s291, 2
      %s295 = sadd.s32 %s293, %s294
      %s296 = smul.addr %s295, 2
      %s297 = scalar_lea.vmem %s2, %s296
      %p298 = scmp.lt.s32.totalorder %s19, 1
      %s299 = scalar_select %p298, %s19, 1
      %p300 = scmp.lt.s32.totalorder %s20, 0
      %s301 = scalar_select %p300, %s20, 0
      %s302 = smul.addr %s299, 2
      %s303 = sadd.s32 %s301, %s302
      %s304 = smul.addr %s303, 2
      %s305 = scalar_lea.vmem %s3, %s304
      %p306 = scmp.lt.s32.totalorder %s19, 1
      %s307 = scalar_select %p306, %s19, 1
      %p308 = scmp.lt.s32.totalorder %s20, 0
      %s309 = scalar_select %p308, %s20, 0
      %s310 = sadd.s32 %s309, %s307
      %s311 = scalar_lea.vmem %s4, %s310
      %v312 = vld [vmem:[%s282] sm:$0x3]
      %v313 = vld [vmem:[%s289] sm:$0x3]
      %vm314 = vcmp.eq.f32.partialorder %v313, 1.0
      %v315 = vsel %vm314, 1, 0
      %v316 = vcvt.s32.f32 %v315
      %vm317 = vcmp.eq.f32.partialorder %v313, 0.0
      %v318 = vsel %vm317, 1, 0
      %v319 = vcvt.s32.f32 %v318
      %v320 = vsub.f32 1.0, %v312
      %v321 = vadd.f32 %v312, 1e-05
      %v322 = vlog2.pop %v321
      %v323 = vmul.f32 %v322, 0.6931472
      %v324 = vmul.f32 %v320, %v320
      %v325 = vmul.f32 %v323, %v324
      %v326 = vmul.f32 %v325, %v316
      %v327 = vadd.f32 %v320, 1e-05
      %v328 = vlog2.pop %v327
      %v329 = vmul.f32 %v328, 0.6931472
      %v330 = vmul.f32 %v312, %v312
      %v331 = vmul.f32 %v329, %v330
      %v332 = vmul.f32 %v331, %v319
      %v333 = vadd.f32 %v326, %v332
      %v334 = vmul.f32 %v333, 0.5
      %v335 = vld [vmem:[%s297] sm:$0x3]
      %v336 = vld [vmem:[%s305] sm:$0x3]
      %v337 = vsub.f32 %v335, %v336
      %v338 = vand.u32 2147483647, %v337
      %vm339 = vcmp.lt.f32.partialorder %v338, 1.0
      %v340 = vmul.f32 %v337, 0.5
      %v341 = vmul.f32 %v340, %v337
      %v342 = vsub.f32 %v338, 0.5
      %v343 = vsel %vm339, %v341, %v342
      %v344 = vadd.f32 %v343, 0.0
      %s345 = scalar_lea.vmem %s297, 2
      %v346 = vld [vmem:[%s345] sm:$0x3]
      %s347 = scalar_lea.vmem %s305, 2
      %v348 = vld [vmem:[%s347] sm:$0x3]
      %v349 = vsub.f32 %v346, %v348
      %v350 = vand.u32 2147483647, %v349
      %vm351 = vcmp.lt.f32.partialorder %v350, 1.0
      %v352 = vmul.f32 %v349, 0.5
      %v353 = vmul.f32 %v352, %v349
      %v354 = vsub.f32 %v350, 0.5
      %v355 = vsel %vm351, %v353, %v354
      %v356 = vadd.f32 %v344, %v355
      %v357 = vmul.f32 %v356, %v313
      %v358 = vmul.f32 %v357, 0.5
      %v359 = vmul.f32 %v334, 0.5
      %v360 = vsub.f32 %v358, %v359
      %vm361 = vcmask 1041408
      %v362 = vsel %vm361, %v360, 0.0
      %v363 = vrot.slane %v362, 4
      %v364 = vadd.f32 %v362, %v363
      %v365 = vrot.slane %v364, 2
      %v366 = vadd.f32 %v364, %v365
      %v367 = vrot.slane %v366, 1
      %v368 = vadd.f32 %v366, %v367
      %369 = vst [vmem:[%s311] sm:$0x1] %v368
      %p370 = scmp.lt.s32.totalorder %s19, 1
      %s371 = scalar_select %p370, %s19, 1
      %p372 = scmp.lt.s32.totalorder %s20, 0
      %s373 = scalar_select %p372, %s20, 0
      %s374 = sadd.s32 %s373, %s371
      %s375 = scalar_lea.vmem %s4, %s374
      // Predicated region
      $region37: #{_lambda_.1} parent=35 // pred_check
        %p376 = pneg %p159
      $region38: #{_lambda_.1} parent=35 // pred_check_branch
        %378 = sbr.rel (%p376) target = $region40
      $region39: #{_lambda_.1} parent=35 // pred_region
        _
      $region40: #{_lambda_.1} parent=35 // pred_fallthru
        _
    $region36: #{_lambda_.1} parent=5 // pred_fallthru
      _
    %p379 = scmp.le.s32.totalorder 2, %s10
    // Predicated region
    $region41: #{_lambda_.1} parent=5 // pred_check
      %p380 = pneg %p379
    $region42: #{_lambda_.1} parent=5 // pred_check_branch
      %382 = sbr.rel (%p380) target = $region44
    $region43: #{_lambda_.1} parent=5 // pred_region
      %s383 = ssub.s32 %s10, 2
      // Predicated region
      $region45: #{_lambda_.1} parent=43 // pred_check
        %p384 = pneg %p165
      $region46: #{_lambda_.1} parent=43 // pred_check_branch
        %386 = sbr.rel (%p384) target = $region48
      $region47: #{_lambda_.1} parent=43 // pred_region
        %p387 = scmp.lt.s32.totalorder %s21, 1
        %s388 = scalar_select %p387, %s21, 1
        %p389 = scmp.lt.s32.totalorder %s22, 0
        %s390 = scalar_select %p389, %s22, 0
        %s391 = sadd.s32 %s390, %s388
        %s392 = scalar_lea.vmem %s4, %s391
      $region48: #{_lambda_.1} parent=43 // pred_fallthru
        _
    $region44: #{_lambda_.1} parent=5 // pred_fallthru
      _
  $region6: #{_lambda_.1} parent=0 // loop_footer
    %s14 = sadd.s32 1, %s10
  $region7: #{_lambda_.1} parent=0 // loop_footer_branch
    %9 = sbr.rel target = $region3
  $region8: #{_lambda_.1} parent=0 // loop_exit
    _

</llo_original>
